<compile_context>
chip_gen: v7x
topology: tpu7x:2x2x1
jax: 0.10.0
libtpu: 0.0.40
codegen_flags: <defaults>
</compile_context>

<pallas_src>
import functools

import jax
import jax.numpy as jnp
import numpy as np
from jax.experimental import pallas as pl
from jax.experimental.pallas import tpu as pltpu

_TARGET_BLOCK_BYTES = 2 * 1024 * 1024   # ~2 MiB per block (f32 accounting)
_LANE_WIDTH = 1024                      # lane-dense slab width (mult. of 128)
_MAX_TILE_ROWS = 512


def _round_up(x: int, m: int) -> int:
    return ((x + m - 1) // m) * m


def _sublane_multiple(dtype) -> int:
    # Min second-to-last tile dim per dtype packing (f32: 8, bf16: 16, int8: 32).
    return {4: 8, 2: 16, 1: 32}.get(jnp.dtype(dtype).itemsize, 8)


def _pick_tile_rows(total_rows: int, row_bytes: int, sub: int) -> int:
    """Rows per block: power-of-two multiple of `sub`, block <= ~2 MiB,
    <= 512 rows, and >= 2 grid steps whenever there is enough work (v7x)."""
    budget = max(sub, _TARGET_BLOCK_BYTES // max(1, row_bytes))
    cap = min(_MAX_TILE_ROWS, budget, _round_up(total_rows, sub))
    tm = sub
    while tm * 2 <= cap:
        tm *= 2
    while tm > sub and pl.cdiv(total_rows, tm) < 2:
        tm //= 2
    return tm


def _robust(v, rho2, out_dtype):
    """rho2 * v / (v + rho2) with the divide routed through the EUP slot."""
    denom = v + rho2
    r = pl.reciprocal(denom, approx=True)   # EUP vrcp (keeps VALU slots free)
    r = r * (2.0 - denom * r)               # one Newton step -> ~f32 accuracy
    return (rho2 * v * r).astype(out_dtype)


def _gmof_elem_kernel(x_ref, o_ref, *, rho2):
    x = x_ref[...].astype(jnp.float32)
    sq = x * x
    o_ref[...] = _robust(sq, rho2, o_ref.dtype)


def _gmof_sqrt_kernel(x_ref, o_ref, *, rho2):
    # x: (TB, D, 128) -- D on sublanes, 128 rows on lanes.
    x = x_ref[...].astype(jnp.float32)
    s = jnp.sqrt(jnp.sum(x * x, axis=1, keepdims=True))   # (TB, 1, 128)
    o_ref[...] = _robust(s, rho2, o_ref.dtype)


def _gmof_elementwise(residual, rho2):
    """sqrt=False path: lane-dense flattened slab, big elementwise tiles."""
    orig_shape = residual.shape
    dtype = residual.dtype
    T = int(np.prod(orig_shape)) if residual.ndim else 1
    sub = _sublane_multiple(dtype)

    W = min(_LANE_WIDTH, _round_up(max(T, 1), 128))
    R = pl.cdiv(T, W)
    tm = _pick_tile_rows(R, W * 4, sub)
    Rpad = _round_up(R, tm)
    Tpad = Rpad * W

    flat = residual.reshape(T)
    if Tpad != T:
        flat = jnp.pad(flat, (0, Tpad - T))
    x2d = flat.reshape(Rpad, W)

    out = pl.pallas_call(
        functools.partial(_gmof_elem_kernel, rho2=rho2),
        out_shape=jax.ShapeDtypeStruct((Rpad, W), dtype),
        grid=(Rpad // tm,),
        in_specs=[pl.BlockSpec((tm, W), lambda i: (i, 0))],
        out_specs=pl.BlockSpec((tm, W), lambda i: (i, 0)),
        compiler_params=pltpu.CompilerParams(
            dimension_semantics=("parallel",)),
    )(x2d)
    return out.reshape(Tpad)[:T].reshape(orig_shape)


def _gmof_rownorm(residual, rho2):
    """sqrt=True path: rows on lanes, reduce D over the sublane axis."""
    orig_shape = residual.shape
    dtype = residual.dtype
    D = int(orig_shape[-1])
    N = int(np.prod(orig_shape[:-1])) if len(orig_shape) > 1 else 1
    sub = _sublane_multiple(dtype)

    G = pl.cdiv(N, 128)                      # 128-row groups (rows -> lanes)
    # Note: for unusually large D (> ~500) the minimum tile still gives
    # ~sub*D*128*4-byte blocks; typical GMoF residuals have tiny D (2/3).
    tb = _pick_tile_rows(G, D * 128 * 4, sub)
    Gpad = _round_up(G, tb)
    Npad = Gpad * 128

    x2d = residual.reshape(N, D)
    if Npad != N:
        x2d = jnp.pad(x2d, ((0, Npad - N), (0, 0)))
    # Layout plumbing only (XLA side): (Npad, D) -> (Gpad, D, 128).
    x3d = x2d.reshape(Gpad, 128, D).transpose(0, 2, 1)

    out = pl.pallas_call(
        functools.partial(_gmof_sqrt_kernel, rho2=rho2),
        out_shape=jax.ShapeDtypeStruct((Gpad, 1, 128), dtype),
        grid=(Gpad // tb,),
        in_specs=[pl.BlockSpec((tb, D, 128), lambda i: (i, 0, 0))],
        out_specs=pl.BlockSpec((tb, 1, 128), lambda i: (i, 0, 0)),
        compiler_params=pltpu.CompilerParams(
            dimension_semantics=("parallel",)),
    )(x3d)
    out_flat = out.reshape(Npad)[:N]
    return out_flat.reshape(orig_shape[:-1] + (1,))


def gmof(residual, sqrt: bool, rho: float = 100.0):
    """Pallas implementation of GMoF.forward(residual, sqrt)."""
    rho2 = float(rho) ** 2
    if sqrt:
        return _gmof_rownorm(residual, rho2)
    return _gmof_elementwise(residual, rho2)


def gmof_ref(residual, sqrt: bool, rho: float = 100.0):
    """Pure-JAX reference matching the PyTorch semantics."""
    rho2 = float(rho) ** 2
    squared_res = residual ** 2
    if sqrt:
        squared_res = jnp.sqrt(squared_res.sum(-1))[..., None]
    dist = squared_res / (squared_res + rho2)
    return rho2 * dist


if __name__ == "__main__":
    key = jax.random.PRNGKey(0)
    # Small residual tensor, e.g. batch=2, joints=8, feature dim=32.
    residual = jax.random.normal(key, (2, 8, 32), dtype=jnp.float32) * 50.0
    rho = 100.0

    # sqrt=False path (elementwise, lane-dense slab).
    out_false = jax.block_until_ready(gmof(residual, sqrt=False, rho=rho))
    ref_false = gmof_ref(residual, sqrt=False, rho=rho)
    np.testing.assert_allclose(np.asarray(out_false), np.asarray(ref_false),
                               rtol=1e-4, atol=1e-4)
    assert out_false.shape == residual.shape

    # sqrt=True path (rows on lanes, sublane reduction over D).
    out_true = jax.block_until_ready(gmof(residual, sqrt=True, rho=rho))
    ref_true = gmof_ref(residual, sqrt=True, rho=rho)
    np.testing.assert_allclose(np.asarray(out_true), np.asarray(ref_true),
                               rtol=1e-4, atol=1e-4)
    assert out_true.shape == residual.shape[:-1] + (1,)

    print("KERNEL_OK")
</pallas_src>

<mosaic_0001>
module attributes {stable_mosaic.version = 11 : i64} {
  func.func @_gmof_elem_kernel(%arg0: i32, %arg1: memref<8x512xf32, #tpu.memory_space<vmem>>, %arg2: memref<8x512xf32, #tpu.memory_space<vmem>>) attributes {dimension_semantics = [#tpu.dimension_semantics<parallel>], iteration_bounds = array<i64: 1>, scalar_prefetch = 0 : i64, scratch_operands = 0 : i64, tpu.core_type = #tpu.core_type<tc>, window_params = [{transform_indices = @transform_0, window_bounds = array<i64: 8, 512>}, {transform_indices = @transform_1, window_bounds = array<i64: 8, 512>}]} {
    %c0 = arith.constant 0 : index
    %c0_0 = arith.constant 0 : index
    %0 = vector.load %arg1[%c0, %c0_0] : memref<8x512xf32, #tpu.memory_space<vmem>>, vector<8x512xf32>
    %1 = arith.mulf %0, %0 : vector<8x512xf32>
    %cst = arith.constant 1.000000e+04 : f32
    %2 = vector.broadcast %cst : f32 to vector<8x512xf32>
    %3 = arith.addf %1, %2 : vector<8x512xf32>
    %4 = tpu.reciprocal %3 {approx = true} : vector<8x512xf32> -> vector<8x512xf32>
    %5 = arith.mulf %3, %4 : vector<8x512xf32>
    %cst_1 = arith.constant 2.000000e+00 : f32
    %6 = vector.broadcast %cst_1 : f32 to vector<8x512xf32>
    %7 = arith.subf %6, %5 : vector<8x512xf32>
    %8 = arith.mulf %4, %7 : vector<8x512xf32>
    %cst_2 = arith.constant 1.000000e+04 : f32
    %9 = vector.broadcast %cst_2 : f32 to vector<8x512xf32>
    %10 = arith.mulf %9, %1 : vector<8x512xf32>
    %11 = arith.mulf %10, %8 : vector<8x512xf32>
    %c0_3 = arith.constant 0 : index
    %c0_4 = arith.constant 0 : index
    %12 = vector.load %arg2[%c0_3, %c0_4] : memref<8x512xf32, #tpu.memory_space<vmem>>, vector<8x512xf32>
    tpu.vector_store %arg2[%c0_3, %c0_4], %11 {strides = array<i32>} : memref<8x512xf32, #tpu.memory_space<vmem>>, vector<8x512xf32>,
    return
  }
  func.func @transform_0(%arg0: i32) -> (i32, i32) {
    %c0_i32 = arith.constant 0 : i32
    %c0_i32_0 = arith.constant 0 : i32
    return %arg0, %c0_i32 : i32, i32
  }
  func.func @transform_1(%arg0: i32) -> (i32, i32) {
    %c0_i32 = arith.constant 0 : i32
    %c0_i32_0 = arith.constant 0 : i32
    return %arg0, %c0_i32 : i32, i32
  }
}

</mosaic_0001>

<llo_original>
// kernel: tpu_custom_call.1
$region0: #{tpu_custom_call.1}
  #allocation0 [shape = 'u32[]', space=smem, size = 0x4, offset = 0x4, fixed_abs, tag = 'smem constant byte address 0x4 - core index']
  #allocation1 [shape = 'u32[144,128]{1,0:T(1,128)}', space=vmem, size = 0x12000, scoped, tag = 'internal scratch']
  %s0 = inlined_call_operand.hbm [shape: f32[8,512], index: 0, kind: input, shape index: {}]
  %s1 = inlined_call_operand.hbm [shape: f32[8,512], index: 1, kind: output, shape index: {}]
  %s2 = sld [smem:[#allocation0]]
  $region18: #{tpu_custom_call.1} parent=0
    _
  %s4 = ssub.s32 1, %s2
  %s5 = scalar_select 0, %s4, %s2
  $region1: #{tpu_custom_call.1} parent=0
    #allocation2 [shape = 'u8[16384]{0}', space=vmem, size = 0x4000, scoped, tag = 'input window, operand 0, single buffered']
    #allocation3 [shape = 's32[1]{0}', space=sflag, size = 0x4, scoped, tag = 'scoped memory for tpu_custom_call.1']
    #allocation4 [shape = 's32[1]{0}', space=sflag, size = 0x4, scoped, tag = 'scoped memory for tpu_custom_call.1']
    #allocation5 [shape = 'u8[16384]{0}', space=vmem, size = 0x4000, scoped, tag = 'output window, operand 0, single buffered']
    %6 = vsyncpa [#allocation3], 0
    %7 = vsyncpa [#allocation4], 0
    // Predicated region
    $region2: #{tpu_custom_call.1} parent=1 // pred_check
      _
    $region3: #{tpu_custom_call.1} parent=1 // pred_check_branch
      %9 = sbr.rel (0) target = $region5
    $region4: #{tpu_custom_call.1} parent=1 // pred_region
      %s11 = ssub.s32 512, 512
      %12 = vsyncadd [#allocation3], %s11
      %s14 = sshll.u32 [#allocation2], 4
      %s15 = int_to_ptr.vmem [resolvable:$true] %s14
      %17 = dma.hbm_to_vmem [thread:$0]  %s0, 512, %s15, [#allocation3]
    $region5: #{tpu_custom_call.1} parent=1 // pred_fallthru
      _
    // Predicated region
    $region6: #{tpu_custom_call.1} parent=1 // pred_check
      _
    $region7: #{tpu_custom_call.1} parent=1 // pred_check_branch
      %19 = sbr.rel (0) target = $region9
    $region8: #{tpu_custom_call.1} parent=1 // pred_region
      %20 = dma.done [#allocation3], 512
    $region9: #{tpu_custom_call.1} parent=1 // pred_fallthru
      _
    %v21 = vld [vmem:[#allocation2] sm:$0xff]
    %v22 = vld [vmem:[#allocation2 + $0x8] sm:$0xff]
    %v23 = vld [vmem:[#allocation2 + $0x10] sm:$0xff]
    %v24 = vld [vmem:[#allocation2 + $0x18] sm:$0xff]
    %v25 = vmul.f32 %v21, %v21
    %v26 = vmul.f32 %v22, %v22
    %v27 = vmul.f32 %v23, %v23
    %v28 = vmul.f32 %v24, %v24
    %v29 = vadd.f32 %v25, 10000.0
    %v30 = vadd.f32 %v26, 10000.0
    %v31 = vadd.f32 %v27, 10000.0
    %v32 = vadd.f32 %v28, 10000.0
    %v33 = vrcp.pop %v29
    %v34 = vrcp.pop %v30
    %v35 = vrcp.pop %v31
    %v36 = vrcp.pop %v32
    %v37 = vmul.f32 %v29, %v33
    %v38 = vmul.f32 %v30, %v34
    %v39 = vmul.f32 %v31, %v35
    %v40 = vmul.f32 %v32, %v36
    %v41 = vsub.f32 2.0, %v37
    %v42 = vsub.f32 2.0, %v38
    %v43 = vsub.f32 2.0, %v39
    %v44 = vsub.f32 2.0, %v40
    %v45 = vmul.f32 %v33, %v41
    %v46 = vmul.f32 %v34, %v42
    %v47 = vmul.f32 %v35, %v43
    %v48 = vmul.f32 %v36, %v44
    %v49 = vmul.f32 %v25, 10000.0
    %v50 = vmul.f32 %v26, 10000.0
    %v51 = vmul.f32 %v27, 10000.0
    %v52 = vmul.f32 %v28, 10000.0
    %v53 = vmul.f32 %v49, %v45
    %v54 = vmul.f32 %v50, %v46
    %v55 = vmul.f32 %v51, %v47
    %v56 = vmul.f32 %v52, %v48
    %57 = vst [vmem:[#allocation5] sm:$0xff] %v53
    %58 = vst [vmem:[#allocation5 + $0x8] sm:$0xff] %v54
    %59 = vst [vmem:[#allocation5 + $0x10] sm:$0xff] %v55
    %60 = vst [vmem:[#allocation5 + $0x18] sm:$0xff] %v56
    // Predicated region
    $region10: #{tpu_custom_call.1} parent=1 // pred_check
      _
    $region11: #{tpu_custom_call.1} parent=1 // pred_check_branch
      %62 = sbr.rel (0) target = $region13
    $region12: #{tpu_custom_call.1} parent=1 // pred_region
      %s64 = ssub.s32 512, 512
      %65 = vsyncadd [#allocation4], %s64
      %s67 = sshll.u32 [#allocation5], 4
      %s68 = int_to_ptr.vmem [resolvable:$true] %s67
      %70 = dma.vmem_to_hbm [thread:$0]  %s68, 512, %s1, [#allocation4]
    $region13: #{tpu_custom_call.1} parent=1 // pred_fallthru
      _
    // Predicated region
    $region14: #{tpu_custom_call.1} parent=1 // pred_check
      _
    $region15: #{tpu_custom_call.1} parent=1 // pred_check_branch
      %72 = sbr.rel (0) target = $region17
    $region16: #{tpu_custom_call.1} parent=1 // pred_region
      %73 = dma.done [#allocation4], 512
    $region17: #{tpu_custom_call.1} parent=1 // pred_fallthru
      _
    %74 = vsyncpa [#allocation3], 1
    %75 = vsyncpa [#allocation4], 1

</llo_original>
